<compile_context>
chip_gen: v7x
topology: tpu7x:2x2x1
jax: 0.10.0
libtpu: 0.0.40
codegen_flags: <defaults>
</compile_context>

<pallas_src>
import math

import jax
import jax.numpy as jnp
from jax.experimental import pallas as pl
from jax.experimental.pallas import tpu as pltpu


def _round_up(a, b):
    return ((a + b - 1) // b) * b


def _block_diag2(w):
    """[[w, 0], [0, w]] without relying on jax.scipy (tiny, built once)."""
    z = jnp.zeros_like(w)
    top = jnp.concatenate([w, z], axis=1)
    bot = jnp.concatenate([z, w], axis=1)
    return jnp.concatenate([top, bot], axis=0)


def _mlp_kernel(x_ref, w1_ref, b1_ref, w2_ref, b2_ref, o_ref):
    # x_ref:  (TMF, 2H) f32  -- two tokens folded per 128-lane row
    # w1_ref: (2H, 2D) bf16  -- block-diag(W1^T, W1^T), VMEM resident
    # b1_ref: (1, 2D)  f32   -- concat(b1, b1)
    # w2_ref: (2D, 2H) bf16  -- block-diag(W2^T, W2^T), VMEM resident
    # b2_ref: (1, 2H)  f32   -- concat(b2, b2)
    # o_ref:  (TMF, 2H) f32  -- folded output, lane-dense stores
    xb = x_ref[...].astype(jnp.bfloat16)

    # fc1 (folded): bf16 operands, f32 MXU accumulation; bias add in f32.
    h = jnp.dot(xb, w1_ref[...], preferred_element_type=jnp.float32) + b1_ref[...]

    # GELU, tanh approximation (EUP tanh; VALU stays free for the rest).
    h = jax.nn.gelu(h, approximate=True)

    # dropout(p=0.1): inference mode -> identity

    # fc2 (folded): bf16 operands, f32 accumulation.
    out = (
        jnp.dot(h.astype(jnp.bfloat16), w2_ref[...], preferred_element_type=jnp.float32)
        + b2_ref[...]
    )

    # second dropout -> identity
    o_ref[...] = out.astype(o_ref.dtype)


def mlp_forward(x, w1, b1, w2, b2, *, tile_m=2048):
    """x: (B, S, H).  w1: (D, H), b1: (D,), w2: (H, D), b2: (H,)  (PyTorch layout)."""
    B, S, H = x.shape
    D = w1.shape[0]
    M = B * S

    # Pair-folding assumes two tokens fit exactly in one 128-lane vreg row.
    assert 2 * H == 128, "lane-dense pair folding assumes hidden_size == 64"

    # Token-tile selection: multiple of 16 so the folded tile is a multiple of
    # 8 f32 sublanes; capped at tile_m; when there is enough work, keep >= 2
    # tiles so v7x's two TensorCores both get a share (neutral on v5e/v6e).
    TM = min(tile_m, _round_up(M, 16))
    if M >= 1024:
        TM = min(TM, _round_up(pl.cdiv(M, 2), 16))
    M_pad = _round_up(M, TM)
    TMF = TM // 2                      # folded rows per tile

    x2d = x.reshape(M, H)
    if M_pad != M:
        # TODO(synk): ragged tail is handled by padding (one extra HBM pass on
        # the activation); prefer shapes where M % TM == 0.
        x2d = jnp.pad(x2d, ((0, M_pad - M), (0, 0)))
    xf = x2d.reshape(M_pad // 2, 2 * H)          # free row-major fold

    # Block-diagonal duplicated weights -> both matmuls are lane-dense on the
    # folded layout.  Tiny ((2H,2D)+(2D,2H) bf16 ~ 256 KiB); if this wrapper is
    # called in a loop, precompute these once at parameter-load time.
    w1t = w1.T.astype(jnp.bfloat16)              # (H, D)
    w2t = w2.T.astype(jnp.bfloat16)              # (D, H)
    w1_big = _block_diag2(w1t)                   # (2H, 2D)
    w2_big = _block_diag2(w2t)                   # (2D, 2H)
    b1_big = jnp.concatenate([b1, b1]).reshape(1, 2 * D).astype(jnp.float32)
    b2_big = jnp.concatenate([b2, b2]).reshape(1, 2 * H).astype(jnp.float32)

    grid = (M_pad // TM,)
    cost = pl.CostEstimate(
        flops=4 * M_pad * H * D,                 # two matmuls (effective)
        transcendentals=M_pad * D,               # tanh on the (M, D) intermediate
        bytes_accessed=4 * M_pad * H * 2 + 2 * (2 * H) * (2 * D) * 2 * 2,
    )

    outf = pl.pallas_call(
        _mlp_kernel,
        out_shape=jax.ShapeDtypeStruct((M_pad // 2, 2 * H), jnp.float32),
        grid_spec=pl.GridSpec(
            grid=grid,
            in_specs=[
                pl.BlockSpec((TMF, 2 * H), lambda i: (i, 0)),    # folded x, streamed
                pl.BlockSpec((2 * H, 2 * D), lambda i: (0, 0)),  # W1 block-diag, resident
                pl.BlockSpec((1, 2 * D), lambda i: (0, 0)),      # b1, resident
                pl.BlockSpec((2 * D, 2 * H), lambda i: (0, 0)),  # W2 block-diag, resident
                pl.BlockSpec((1, 2 * H), lambda i: (0, 0)),      # b2, resident
            ],
            out_specs=pl.BlockSpec((TMF, 2 * H), lambda i: (i, 0)),
        ),
        compiler_params=pltpu.CompilerParams(
            dimension_semantics=("parallel",),   # shard M tiles across TCs (v7x)
        ),
        cost_estimate=cost,
    )(xf, w1_big, b1_big, w2_big, b2_big)

    out2d = outf.reshape(M_pad, H)
    if M_pad != M:
        out2d = out2d[:M]
    return out2d.astype(x.dtype).reshape(B, S, H)


def init_params(key, hidden_size=64, mlp_dim=256):
    """Deterministic init mirroring the PyTorch module's _init_weights."""
    k1, k2, k3, k4 = jax.random.split(key, 4)

    # xavier_uniform_ on fc1.weight (mlp_dim, hidden): bound = sqrt(6/(fan_in+fan_out))
    bound1 = math.sqrt(6.0 / (hidden_size + mlp_dim))
    w1 = jax.random.uniform(k1, (mlp_dim, hidden_size), jnp.float32,
                            minval=-bound1, maxval=bound1)
    # xavier_uniform_ on fc2.weight (hidden, mlp_dim)
    bound2 = math.sqrt(6.0 / (mlp_dim + hidden_size))
    w2 = jax.random.uniform(k2, (hidden_size, mlp_dim), jnp.float32,
                            minval=-bound2, maxval=bound2)
    # normal_(std=1e-6) biases
    b1 = 1e-6 * jax.random.normal(k3, (mlp_dim,), jnp.float32)
    b2 = 1e-6 * jax.random.normal(k4, (hidden_size,), jnp.float32)
    return w1, b1, w2, b2


def mlp_reference(x, w1, b1, w2, b2):
    """Pure-JAX f32 reference matching the PyTorch module in eval() mode."""
    h = jnp.einsum("bsh,dh->bsd", x, w1) + b1
    h = 0.5 * h * (1.0 + jax.lax.erf(h / jnp.sqrt(2.0)))   # torch's exact-erf GELU
    out = jnp.einsum("bsd,hd->bsh", h, w2) + b2
    return out


if __name__ == "__main__":
    B, S, H, D = 2, 8, 64, 256

    key = jax.random.PRNGKey(0)
    kx, kp = jax.random.split(key)
    x = jax.random.normal(kx, (B, S, H), jnp.float32)
    w1, b1, w2, b2 = init_params(kp, hidden_size=H, mlp_dim=D)

    fwd = jax.jit(mlp_forward)
    out = jax.block_until_ready(fwd(x, w1, b1, w2, b2))

    ref = mlp_reference(x, w1, b1, w2, b2)
    assert out.shape == (B, S, H)
    # bf16 MXU operands + tanh-approx GELU vs exact f32 reference -> loose tolerance.
    assert jnp.allclose(out, ref, atol=5e-2, rtol=5e-2), "mismatch vs reference"

    print("KERNEL_OK")
</pallas_src>

<mosaic_0001>
module attributes {stable_mosaic.version = 11 : i64} {
  func.func @_mlp_kernel(%arg0: i32, %arg1: memref<8x128xf32, #tpu.memory_space<vmem>>, %arg2: memref<128x512xbf16, #tpu.memory_space<vmem>>, %arg3: memref<1x512xf32, #tpu.memory_space<vmem>>, %arg4: memref<512x128xbf16, #tpu.memory_space<vmem>>, %arg5: memref<1x128xf32, #tpu.memory_space<vmem>>, %arg6: memref<8x128xf32, #tpu.memory_space<vmem>>) attributes {dimension_semantics = [#tpu.dimension_semantics<parallel>], iteration_bounds = array<i64: 1>, scalar_prefetch = 0 : i64, scratch_operands = 0 : i64, tpu.core_type = #tpu.core_type<tc>, window_params = [{transform_indices = @transform_0, window_bounds = array<i64: 8, 128>}, {pipeline_mode = #tpu.pipeline_mode<synchronous>, transform_indices = @transform_1, window_bounds = array<i64: 128, 512>}, {pipeline_mode = #tpu.pipeline_mode<synchronous>, transform_indices = @transform_2, window_bounds = array<i64: 1, 512>}, {pipeline_mode = #tpu.pipeline_mode<synchronous>, transform_indices = @transform_3, window_bounds = array<i64: 512, 128>}, {pipeline_mode = #tpu.pipeline_mode<synchronous>, transform_indices = @transform_4, window_bounds = array<i64: 1, 128>}, {transform_indices = @transform_5, window_bounds = array<i64: 8, 128>}]} {
    %c0 = arith.constant 0 : index
    %c0_0 = arith.constant 0 : index
    %0 = vector.load %arg1[%c0, %c0_0] : memref<8x128xf32, #tpu.memory_space<vmem>>, vector<8x128xf32>
    %1 = arith.truncf %0 : vector<8x128xf32> to vector<8x128xbf16>
    %c0_1 = arith.constant 0 : index
    %c0_2 = arith.constant 0 : index
    %2 = vector.load %arg2[%c0_1, %c0_2] : memref<128x512xbf16, #tpu.memory_space<vmem>>, vector<128x512xbf16>
    %cst = arith.constant dense<0.000000e+00> : vector<8x512xf32>
    %3 = tpu.matmul %1, %2, %cst {dimension_numbers = #tpu.dot_dimension_numbers<[1], [0], [0], [1], [0, 0, 1, 1], [], []>} : vector<8x128xbf16>, vector<128x512xbf16>, vector<8x512xf32> -> vector<8x512xf32>
    %c0_3 = arith.constant 0 : index
    %c0_4 = arith.constant 0 : index
    %4 = vector.load %arg3[%c0_3, %c0_4] : memref<1x512xf32, #tpu.memory_space<vmem>>, vector<1x512xf32>
    %5 = vector.broadcast %4 : vector<1x512xf32> to vector<8x512xf32>
    %6 = arith.addf %3, %5 : vector<8x512xf32>
    %7 = arith.mulf %6, %6 : vector<8x512xf32>
    %8 = arith.mulf %6, %7 : vector<8x512xf32>
    %cst_5 = arith.constant 4.471500e-02 : f32
    %9 = vector.broadcast %cst_5 : f32 to vector<8x512xf32>
    %10 = arith.mulf %9, %8 : vector<8x512xf32>
    %11 = arith.addf %6, %10 : vector<8x512xf32>
    %cst_6 = arith.constant 0.797884583 : f32
    %12 = vector.broadcast %cst_6 : f32 to vector<8x512xf32>
    %13 = arith.mulf %12, %11 : vector<8x512xf32>
    %14 = math.tanh %13 : vector<8x512xf32>
    %cst_7 = arith.constant 1.000000e+00 : f32
    %15 = vector.broadcast %cst_7 : f32 to vector<8x512xf32>
    %16 = arith.addf %15, %14 : vector<8x512xf32>
    %cst_8 = arith.constant 5.000000e-01 : f32
    %17 = vector.broadcast %cst_8 : f32 to vector<8x512xf32>
    %18 = arith.mulf %17, %16 : vector<8x512xf32>
    %19 = arith.mulf %6, %18 : vector<8x512xf32>
    %20 = arith.truncf %19 : vector<8x512xf32> to vector<8x512xbf16>
    %c0_9 = arith.constant 0 : index
    %c0_10 = arith.constant 0 : index
    %21 = vector.load %arg4[%c0_9, %c0_10] : memref<512x128xbf16, #tpu.memory_space<vmem>>, vector<512x128xbf16>
    %cst_11 = arith.constant dense<0.000000e+00> : vector<8x128xf32>
    %22 = tpu.matmul %20, %21, %cst_11 {dimension_numbers = #tpu.dot_dimension_numbers<[1], [0], [0], [1], [0, 0, 1, 1], [], []>} : vector<8x512xbf16>, vector<512x128xbf16>, vector<8x128xf32> -> vector<8x128xf32>
    %c0_12 = arith.constant 0 : index
    %c0_13 = arith.constant 0 : index
    %23 = vector.load %arg5[%c0_12, %c0_13] : memref<1x128xf32, #tpu.memory_space<vmem>>, vector<1x128xf32>
    %24 = vector.broadcast %23 : vector<1x128xf32> to vector<8x128xf32>
    %25 = arith.addf %22, %24 : vector<8x128xf32>
    %c0_14 = arith.constant 0 : index
    %c0_15 = arith.constant 0 : index
    %26 = vector.load %arg6[%c0_14, %c0_15] : memref<8x128xf32, #tpu.memory_space<vmem>>, vector<8x128xf32>
    tpu.vector_store %arg6[%c0_14, %c0_15], %25 {strides = array<i32>} : memref<8x128xf32, #tpu.memory_space<vmem>>, vector<8x128xf32>,
    return
  }
  func.func @transform_0(%arg0: i32) -> (i32, i32) {
    %c0_i32 = arith.constant 0 : i32
    %c0_i32_0 = arith.constant 0 : i32
    return %arg0, %c0_i32 : i32, i32
  }
  func.func @transform_1(%arg0: i32) -> (i32, i32) {
    %c0_i32 = arith.constant 0 : i32
    %c0_i32_0 = arith.constant 0 : i32
    %c0_i32_1 = arith.constant 0 : i32
    return %c0_i32, %c0_i32_0 : i32, i32
  }
  func.func @transform_2(%arg0: i32) -> (i32, i32) {
    %c0_i32 = arith.constant 0 : i32
    %c0_i32_0 = arith.constant 0 : i32
    %c0_i32_1 = arith.constant 0 : i32
    return %c0_i32, %c0_i32_0 : i32, i32
  }
  func.func @transform_3(%arg0: i32) -> (i32, i32) {
    %c0_i32 = arith.constant 0 : i32
    %c0_i32_0 = arith.constant 0 : i32
    %c0_i32_1 = arith.constant 0 : i32
    return %c0_i32, %c0_i32_0 : i32, i32
  }
  func.func @transform_4(%arg0: i32) -> (i32, i32) {
    %c0_i32 = arith.constant 0 : i32
    %c0_i32_0 = arith.constant 0 : i32
    %c0_i32_1 = arith.constant 0 : i32
    return %c0_i32, %c0_i32_0 : i32, i32
  }
  func.func @transform_5(%arg0: i32) -> (i32, i32) {
    %c0_i32 = arith.constant 0 : i32
    %c0_i32_0 = arith.constant 0 : i32
    return %arg0, %c0_i32 : i32, i32
  }
}

</mosaic_0001>

<llo_original>
// kernel: mlp_forward.1
$region0: #{mlp_forward.1}
  #allocation0 [shape = 'u32[]', space=smem, size = 0x4, offset = 0x4, fixed_abs, tag = 'smem constant byte address 0x4 - core index']
  #allocation1 [shape = 'u32[144,128]{1,0:T(1,128)}', space=vmem, size = 0x12000, scoped, tag = 'internal scratch']
  %s0 = inlined_call_operand.vmem [shape: f32[8,128], index: 0, kind: input, shape index: {}]
  %s1 = inlined_call_operand.vmem [shape: bf16[128,512], index: 1, kind: input, shape index: {}]
  %s2 = inlined_call_operand.vmem [shape: f32[1,512], index: 2, kind: input, shape index: {}]
  %s3 = inlined_call_operand.vmem [shape: bf16[512,128], index: 3, kind: input, shape index: {}]
  %s4 = inlined_call_operand.vmem [shape: f32[1,128], index: 4, kind: input, shape index: {}]
  %s5 = inlined_call_operand.vmem [shape: f32[8,128], index: 5, kind: output, shape index: {}]
  %s6 = sld [smem:[#allocation0]]
  $region30: #{mlp_forward.1} parent=0
    _
  %s8 = ssub.s32 1, %s6
  %s9 = scalar_select 0, %s8, %s6
  // Predicated region
  $region2: #{mlp_forward.1} parent=0 // pred_check
    _
  $region3: #{mlp_forward.1} parent=0 // pred_check_branch
    %11 = sbr.rel (0) target = $region5
  $region4: #{mlp_forward.1} parent=0 // pred_region
    _
  $region5: #{mlp_forward.1} parent=0 // pred_fallthru
    _
  // Predicated region
  $region6: #{mlp_forward.1} parent=0 // pred_check
    _
  $region7: #{mlp_forward.1} parent=0 // pred_check_branch
    %13 = sbr.rel (0) target = $region9
  $region8: #{mlp_forward.1} parent=0 // pred_region
    _
  $region9: #{mlp_forward.1} parent=0 // pred_fallthru
    _
  // Predicated region
  $region10: #{mlp_forward.1} parent=0 // pred_check
    _
  $region11: #{mlp_forward.1} parent=0 // pred_check_branch
    %15 = sbr.rel (0) target = $region13
  $region12: #{mlp_forward.1} parent=0 // pred_region
    _
  $region13: #{mlp_forward.1} parent=0 // pred_fallthru
    _
  // Predicated region
  $region14: #{mlp_forward.1} parent=0 // pred_check
    _
  $region15: #{mlp_forward.1} parent=0 // pred_check_branch
    %17 = sbr.rel (0) target = $region17
  $region16: #{mlp_forward.1} parent=0 // pred_region
    _
  $region17: #{mlp_forward.1} parent=0 // pred_fallthru
    _
  // Predicated region
  $region18: #{mlp_forward.1} parent=0 // pred_check
    _
  $region19: #{mlp_forward.1} parent=0 // pred_check_branch
    %19 = sbr.rel (0) target = $region21
  $region20: #{mlp_forward.1} parent=0 // pred_region
    _
  $region21: #{mlp_forward.1} parent=0 // pred_fallthru
    _
  %v21 = vld [vmem:[%s0] sm:$0xff]
  %v22 = vpack.c.bf16 %v21, %v21
  %v23 = vld [vmem:[%s1] sm:$0xff]
  %v24 = vld [vmem:[%s1 + $0x8] sm:$0xff]
  %v25 = vld [vmem:[%s1 + $0x10] sm:$0xff]
  %v26 = vld [vmem:[%s1 + $0x18] sm:$0xff]
  %v27 = vld [vmem:[%s1 + $0x20] sm:$0xff]
  %v28 = vld [vmem:[%s1 + $0x28] sm:$0xff]
  %v29 = vld [vmem:[%s1 + $0x30] sm:$0xff]
  %v30 = vld [vmem:[%s1 + $0x38] sm:$0xff]
  %v31 = vld [vmem:[%s1 + $0x40] sm:$0xff]
  %v32 = vld [vmem:[%s1 + $0x48] sm:$0xff]
  %v33 = vld [vmem:[%s1 + $0x50] sm:$0xff]
  %v34 = vld [vmem:[%s1 + $0x58] sm:$0xff]
  %v35 = vld [vmem:[%s1 + $0x60] sm:$0xff]
  %v36 = vld [vmem:[%s1 + $0x68] sm:$0xff]
  %v37 = vld [vmem:[%s1 + $0x70] sm:$0xff]
  %v38 = vld [vmem:[%s1 + $0x78] sm:$0xff]
  %v39 = vld [vmem:[%s1 + $0x80] sm:$0xff]
  %v40 = vld [vmem:[%s1 + $0x88] sm:$0xff]
  %v41 = vld [vmem:[%s1 + $0x90] sm:$0xff]
  %v42 = vld [vmem:[%s1 + $0x98] sm:$0xff]
  %v43 = vld [vmem:[%s1 + $0xa0] sm:$0xff]
  %v44 = vld [vmem:[%s1 + $0xa8] sm:$0xff]
  %v45 = vld [vmem:[%s1 + $0xb0] sm:$0xff]
  %v46 = vld [vmem:[%s1 + $0xb8] sm:$0xff]
  %v47 = vld [vmem:[%s1 + $0xc0] sm:$0xff]
  %v48 = vld [vmem:[%s1 + $0xc8] sm:$0xff]
  %v49 = vld [vmem:[%s1 + $0xd0] sm:$0xff]
  %v50 = vld [vmem:[%s1 + $0xd8] sm:$0xff]
  %v51 = vld [vmem:[%s1 + $0xe0] sm:$0xff]
  %v52 = vld [vmem:[%s1 + $0xe8] sm:$0xff]
  %v53 = vld [vmem:[%s1 + $0xf0] sm:$0xff]
  %v54 = vld [vmem:[%s1 + $0xf8] sm:$0xff]
  %v55 = vld [vmem:[%s2] sm:$0xf]
  %v57 = vlaneseq
  %v58 = vshrl.u32 %v57, 7
  %v59 = vsub.s32 0, %v58
  %v60 = vrot.slane %v55, %v59
  %v61 = vlaneseq
  %v62 = vshrl.u32 %v61, 7
  %v63 = vsub.s32 1, %v62
  %v64 = vrot.slane %v55, %v63
  %v65 = vlaneseq
  %v66 = vshrl.u32 %v65, 7
  %v67 = vsub.s32 2, %v66
  %v68 = vrot.slane %v55, %v67
  %v69 = vlaneseq
  %v70 = vshrl.u32 %v69, 7
  %v71 = vsub.s32 3, %v70
  %v72 = vrot.slane %v55, %v71
  %v109 = vunpack.c.l.b16 %v23
  %v110 = vunpack.c.h.b16 %v23
  %v111 = vunpack.c.l.b16 %v24
  %v112 = vunpack.c.h.b16 %v24
  %v113 = vunpack.c.l.b16 %v25
  %v114 = vunpack.c.h.b16 %v25
  %v115 = vunpack.c.l.b16 %v26
  %v116 = vunpack.c.h.b16 %v26
  %v117 = vunpack.c.l.b16 %v27
  %v118 = vunpack.c.h.b16 %v27
  %v119 = vunpack.c.l.b16 %v28
  %v120 = vunpack.c.h.b16 %v28
  %v121 = vunpack.c.l.b16 %v29
  %v122 = vunpack.c.h.b16 %v29
  %v123 = vunpack.c.l.b16 %v30
  %v124 = vunpack.c.h.b16 %v30
  %v125 = vunpack.c.l.b16 %v31
  %v126 = vunpack.c.h.b16 %v31
  %v127 = vunpack.c.l.b16 %v32
  %v128 = vunpack.c.h.b16 %v32
  %v129 = vunpack.c.l.b16 %v33
  %v130 = vunpack.c.h.b16 %v33
  %v131 = vunpack.c.l.b16 %v34
  %v132 = vunpack.c.h.b16 %v34
  %v133 = vunpack.c.l.b16 %v35
  %v134 = vunpack.c.h.b16 %v35
  %v135 = vunpack.c.l.b16 %v36
  %v136 = vunpack.c.h.b16 %v36
  %v137 = vunpack.c.l.b16 %v37
  %v138 = vunpack.c.h.b16 %v37
  %v139 = vunpack.c.l.b16 %v38
  %v140 = vunpack.c.h.b16 %v38
  %v141 = vunpack.c.l.b16 %v39
  %v142 = vunpack.c.h.b16 %v39
  %v143 = vunpack.c.l.b16 %v40
  %v144 = vunpack.c.h.b16 %v40
  %v145 = vunpack.c.l.b16 %v41
  %v146 = vunpack.c.h.b16 %v41
  %v147 = vunpack.c.l.b16 %v42
  %v148 = vunpack.c.h.b16 %v42
  %v149 = vunpack.c.l.b16 %v43
  %v150 = vunpack.c.h.b16 %v43
  %v151 = vunpack.c.l.b16 %v44
  %v152 = vunpack.c.h.b16 %v44
  %v153 = vunpack.c.l.b16 %v45
  %v154 = vunpack.c.h.b16 %v45
  %v155 = vunpack.c.l.b16 %v46
  %v156 = vunpack.c.h.b16 %v46
  %v157 = vunpack.c.l.b16 %v47
  %v158 = vunpack.c.h.b16 %v47
  %v159 = vunpack.c.l.b16 %v48
  %v160 = vunpack.c.h.b16 %v48
  %v161 = vunpack.c.l.b16 %v49
  %v162 = vunpack.c.h.b16 %v49
  %v163 = vunpack.c.l.b16 %v50
  %v164 = vunpack.c.h.b16 %v50
  %v165 = vunpack.c.l.b16 %v51
  %v166 = vunpack.c.h.b16 %v51
  %v167 = vunpack.c.l.b16 %v52
  %v168 = vunpack.c.h.b16 %v52
  %v169 = vunpack.c.l.b16 %v53
  %v170 = vunpack.c.h.b16 %v53
  %v171 = vunpack.c.l.b16 %v54
  %v172 = vunpack.c.h.b16 %v54
  %v173 = vpack.c.b16 %v113, %v109
  %v174 = vpack.c.b16 %v114, %v110
  %v175 = vpack.c.b16 %v115, %v111
  %v176 = vpack.c.b16 %v116, %v112
  %v177 = vpack.c.b16 %v121, %v117
  %v178 = vpack.c.b16 %v122, %v118
  %v179 = vpack.c.b16 %v123, %v119
  %v180 = vpack.c.b16 %v124, %v120
  %v181 = vpack.c.b16 %v129, %v125
  %v182 = vpack.c.b16 %v130, %v126
  %v183 = vpack.c.b16 %v131, %v127
  %v184 = vpack.c.b16 %v132, %v128
  %v185 = vpack.c.b16 %v137, %v133
  %v186 = vpack.c.b16 %v138, %v134
  %v187 = vpack.c.b16 %v139, %v135
  %v188 = vpack.c.b16 %v140, %v136
  %v189 = vpack.c.b16 %v145, %v141
  %v190 = vpack.c.b16 %v146, %v142
  %v191 = vpack.c.b16 %v147, %v143
  %v192 = vpack.c.b16 %v148, %v144
  %v193 = vpack.c.b16 %v153, %v149
  %v194 = vpack.c.b16 %v154, %v150
  %v195 = vpack.c.b16 %v155, %v151
  %v196 = vpack.c.b16 %v156, %v152
  %v197 = vpack.c.b16 %v161, %v157
  %v198 = vpack.c.b16 %v162, %v158
  %v199 = vpack.c.b16 %v163, %v159
  %v200 = vpack.c.b16 %v164, %v160
  %v201 = vpack.c.b16 %v169, %v165
  %v202 = vpack.c.b16 %v170, %v166
  %v203 = vpack.c.b16 %v171, %v167
  %v204 = vpack.c.b16 %v172, %v168
  %237 = vmatprep.subr.bf16.mxu0 %v174
  %238 = vmatpush1.bf16.msra.mxu0 %v173
  %239 = vmatprep.subr.bf16.mxu0 %v178
  %240 = vmatpush1.bf16.msra.mxu0 %v177
  %241 = vmatprep.subr.bf16.mxu0 %v182
  %242 = vmatpush1.bf16.msra.mxu0 %v181
  %243 = vmatprep.subr.bf16.mxu0 %v186
  %244 = vmatpush1.bf16.msra.mxu0 %v185
  %245 = vmatprep.subr.bf16.mxu0 %v190
  %246 = vmatpush1.bf16.msra.mxu0 %v189
  %247 = vmatprep.subr.bf16.mxu0 %v194
  %248 = vmatpush1.bf16.msra.mxu0 %v193
  %249 = vmatprep.subr.bf16.mxu0 %v198
  %250 = vmatpush1.bf16.msra.mxu0 %v197
  %251 = vmatprep.subr.bf16.mxu0 %v202
  %252 = vmatpush1.bf16.msra.mxu0 %v201
  %253 = vmatprep.subr.bf16.mxu0 0
  %254 = vmatpush1.bf16.msra.mxu0 0
  %255 = vmatprep.subr.bf16.mxu0 0
  %256 = vmatpush1.bf16.msra.mxu0 0
  %257 = vmatprep.subr.bf16.mxu0 0
  %258 = vmatpush1.bf16.msra.mxu0 0
  %259 = vmatprep.subr.bf16.mxu0 0
  %260 = vmatpush1.bf16.msra.mxu0 0
  %261 = vmatprep.subr.bf16.mxu0 0
  %262 = vmatpush1.bf16.msra.mxu0 0
  %263 = vmatprep.subr.bf16.mxu0 0
  %264 = vmatpush1.bf16.msra.mxu0 0
  %265 = vmatprep.subr.bf16.mxu0 0
  %266 = vmatpush1.bf16.msra.mxu0 0
  %267 = vmatprep.subr.bf16.mxu0 0
  %268 = vmatpush1.bf16.msra.mxu0 0
  %269 = vmatprep.mubr.bf16.mxu0 0
  %270 = vmatmul.mubr.bf16.gmra.mrb[0].mxu0 %v22
  %v271 = vpop.f32.mrb[0].mxu0
  %v272 = vadd.f32 %v60, %v271
  %v273 = vpop.f32.mrb[0].mxu0
  %v274 = vadd.f32 %v64, %v273
  %v275 = vpop.f32.mrb[0].mxu0
  %v276 = vpop.f32.mrb[0].mxu0
  %277 = vdwg.mxu0
  %278 = vmatprep.subr.bf16.mxu0 %v176
  %279 = vmatpush1.bf16.msra.mxu0 %v175
  %280 = vmatprep.subr.bf16.mxu0 %v180
  %281 = vmatpush1.bf16.msra.mxu0 %v179
  %282 = vmatprep.subr.bf16.mxu0 %v184
  %283 = vmatpush1.bf16.msra.mxu0 %v183
  %284 = vmatprep.subr.bf16.mxu0 %v188
  %285 = vmatpush1.bf16.msra.mxu0 %v187
  %286 = vmatprep.subr.bf16.mxu0 %v192
  %287 = vmatpush1.bf16.msra.mxu0 %v191
  %288 = vmatprep.subr.bf16.mxu0 %v196
  %289 = vmatpush1.bf16.msra.mxu0 %v195
  %290 = vmatprep.subr.bf16.mxu0 %v200
  %291 = vmatpush1.bf16.msra.mxu0 %v199
  %292 = vmatprep.subr.bf16.mxu0 %v204
  %293 = vmatpush1.bf16.msra.mxu0 %v203
  %294 = vmatprep.subr.bf16.mxu0 0
  %295 = vmatpush1.bf16.msra.mxu0 0
  %296 = vmatprep.subr.bf16.mxu0 0
  %297 = vmatpush1.bf16.msra.mxu0 0
  %298 = vmatprep.subr.bf16.mxu0 0
  %299 = vmatpush1.bf16.msra.mxu0 0
  %300 = vmatprep.subr.bf16.mxu0 0
  %301 = vmatpush1.bf16.msra.mxu0 0
  %302 = vmatprep.subr.bf16.mxu0 0
  %303 = vmatpush1.bf16.msra.mxu0 0
  %304 = vmatprep.subr.bf16.mxu0 0
  %305 = vmatpush1.bf16.msra.mxu0 0
  %306 = vmatprep.subr.bf16.mxu0 0
  %307 = vmatpush1.bf16.msra.mxu0 0
  %308 = vmatprep.subr.bf16.mxu0 0
  %309 = vmatpush1.bf16.msra.mxu0 0
  %310 = vmatprep.mubr.bf16.mxu0 0
  %311 = vmatmul.mubr.bf16.gmra.mrb[0].mxu0 %v22
  %v312 = vpop.f32.mrb[0].mxu0
  %v313 = vadd.f32 %v68, %v312
  %v314 = vpop.f32.mrb[0].mxu0
  %v315 = vadd.f32 %v72, %v314
  %v316 = vpop.f32.mrb[0].mxu0
  %v317 = vpop.f32.mrb[0].mxu0
  %318 = vdwg.mxu0
  %v319 = vmul.f32 %v272, %v272
  %v320 = vmul.f32 %v274, %v274
  %v321 = vmul.f32 %v313, %v313
  %v322 = vmul.f32 %v315, %v315
  %v323 = vmul.f32 %v272, %v319
  %v324 = vmul.f32 %v274, %v320
  %v325 = vmul.f32 %v313, %v321
  %v326 = vmul.f32 %v315, %v322
  %v327 = vmul.f32 %v323, 0.044715
  %v328 = vmul.f32 %v324, 0.044715
  %v329 = vmul.f32 %v325, 0.044715
  %v330 = vmul.f32 %v326, 0.044715
  %v331 = vadd.f32 %v272, %v327
  %v332 = vadd.f32 %v274, %v328
  %v333 = vadd.f32 %v313, %v329
  %v334 = vadd.f32 %v315, %v330
  %v335 = vmul.f32 %v331, 0.7978846
  %v336 = vmul.f32 %v332, 0.7978846
  %v337 = vmul.f32 %v333, 0.7978846
  %v338 = vmul.f32 %v334, 0.7978846
  %v339 = vtanh.pop %v335
  %v340 = vtanh.pop %v336
  %v341 = vtanh.pop %v337
  %v342 = vtanh.pop %v338
  %v343 = vadd.f32 %v339, 1.0
  %v344 = vadd.f32 %v340, 1.0
  %v345 = vadd.f32 %v341, 1.0
  %v346 = vadd.f32 %v342, 1.0
  %v347 = vmul.f32 %v343, 0.5
  %v348 = vmul.f32 %v344, 0.5
  %v349 = vmul.f32 %v345, 0.5
  %v350 = vmul.f32 %v346, 0.5
  %v351 = vmul.f32 %v272, %v347
  %v352 = vmul.f32 %v274, %v348
  %v353 = vmul.f32 %v313, %v349
  %v354 = vmul.f32 %v315, %v350
  %v355 = vpack.c.bf16 %v351, %v351
  %v356 = vpack.c.bf16 %v352, %v352
  %v357 = vpack.c.bf16 %v353, %v353
  %v358 = vpack.c.bf16 %v354, %v354
  %v359 = vld [vmem:[%s3] sm:$0xf]
  %v360 = vld [vmem:[%s3 + $0x4] sm:$0xf]
  %v361 = vld [vmem:[%s3 + $0x8] sm:$0xf]
  %v362 = vld [vmem:[%s3 + $0xc] sm:$0xf]
  %v363 = vld [vmem:[%s3 + $0x10] sm:$0xf]
  %v364 = vld [vmem:[%s3 + $0x14] sm:$0xf]
  %v365 = vld [vmem:[%s3 + $0x18] sm:$0xf]
  %v366 = vld [vmem:[%s3 + $0x1c] sm:$0xf]
  %v367 = vld [vmem:[%s3 + $0x20] sm:$0xf]
  %v368 = vld [vmem:[%s3 + $0x24] sm:$0xf]
  %v369 = vld [vmem:[%s3 + $0x28] sm:$0xf]
  %v370 = vld [vmem:[%s3 + $0x2c] sm:$0xf]
  %v371 = vld [vmem:[%s3 + $0x30] sm:$0xf]
  %v372 = vld [vmem:[%s3 + $0x34] sm:$0xf]
  %v373 = vld [vmem:[%s3 + $0x38] sm:$0xf]
  %v374 = vld [vmem:[%s3 + $0x3c] sm:$0xf]
  %v375 = vld [vmem:[%s3 + $0x40] sm:$0xf]
  %v376 = vld [vmem:[%s3 + $0x44] sm:$0xf]
  %v377 = vld [vmem:[%s3 + $0x48] sm:$0xf]
  %v378 = vld [vmem:[%s3 + $0x4c] sm:$0xf]
  %v379 = vld [vmem:[%s3 + $0x50] sm:$0xf]
  %v380 = vld [vmem:[%s3 + $0x54] sm:$0xf]
  %v381 = vld [vmem:[%s3 + $0x58] sm:$0xf]
  %v382 = vld [vmem:[%s3 + $0x5c] sm:$0xf]
  %v383 = vld [vmem:[%s3 + $0x60] sm:$0xf]
  %v384 = vld [vmem:[%s3 + $0x64] sm:$0xf]
  %v385 = vld [vmem:[%s3 + $0x68] sm:$0xf]
  %v386 = vld [vmem:[%s3 + $0x6c] sm:$0xf]
  %v387 = vld [vmem:[%s3 + $0x70] sm:$0xf]
  %v388 = vld [vmem:[%s3 + $0x74] sm:$0xf]
  %v389 = vld [vmem:[%s3 + $0x78] sm:$0xf]
  %v390 = vld [vmem:[%s3 + $0x7c] sm:$0xf]
  %v391 = vld [vmem:[%s3 + $0x80] sm:$0xf]
  %v392 = vld [vmem:[%s3 + $0x84] sm:$0xf]
  %v393 = vld [vmem:[%s3 + $0x88] sm:$0xf]
  %v394 = vld [vmem:[%s3 + $0x8c] sm:$0xf]
  %v395 = vld [vmem:[%s3 + $0x90] sm:$0xf]
  %v396 = vld [vmem:[%s3 + $0x94] sm:$0xf]
  %v397 = vld [vmem:[%s3 + $0x98] sm:$0xf]
  %v398 = vld [vmem:[%s3 + $0x9c] sm:$0xf]
  %v399 = vld [vmem:[%s3 + $0xa0] sm:$0xf]
  %v400 = vld [vmem:[%s3 + $0xa4] sm:$0xf]
  %v401 = vld [vmem:[%s3 + $0xa8] sm:$0xf]
  %v402 = vld [vmem:[%s3 + $0xac] sm:$0xf]
  %v403 = vld [vmem:[%s3 + $0xb0] sm:$0xf]
  %v404 = vld [vmem:[%s3 + $0xb4] sm:$0xf]
  %v405 = vld [vmem:[%s3 + $0xb8] sm:$0xf]
  %v406 = vld [vmem:[%s3 + $0xbc] sm:$0xf]
  %v407 = vld [vmem:[%s3 + $0xc0] sm:$0xf]
  %v408 = vld [vmem:[%s3 + $0xc4] sm:$0xf]
  %v409 = vld [vmem:[%s3 + $0xc8] sm:$0xf]
  %v410 = vld [vmem:[%s3 + $0xcc] sm:$0xf]
  %v411 = vld [vmem:[%s3 + $0xd0] sm:$0xf]
  %v412 = vld [vmem:[%s3 + $0xd4] sm:$0xf]
  %v413 = vld [vmem:[%s3 + $0xd8] sm:$0xf]
  %v414 = vld [vmem:[%s3 + $0xdc] sm:$0xf]
  %v415 = vld [vmem:[%s3 + $0xe0] sm:$0xf]
  %v416 = vld [vmem:[%s3 + $0xe4] sm:$0xf]
  %v417 = vld [vmem:[%s3 + $0xe8] sm:$0xf]
  %v418 = vld [vmem:[%s3 + $0xec] sm:$0xf]
  %v419 = vld [vmem:[%s3 + $0xf0] sm:$0xf]
  %v420 = vld [vmem:[%s3 + $0xf4] sm:$0xf]
  %v421 = vld [vmem:[%s3 + $0xf8] sm:$0xf]
  %v422 = vld [vmem:[%s3 + $0xfc] sm:$0xf]
  %v423 = vld [vmem:[%s4] sm:$0x1]
  %v425 = vlaneseq
  %v426 = vshrl.u32 %v425, 7
  %v427 = vsub.s32 0, %v426
  %v428 = vrot.slane %v423, %v427
  %v494 = vunpack.c.l.b16 %v359
  %v495 = vunpack.c.l.b16 %v360
  %v496 = vunpack.c.l.b16 %v361
  %v497 = vunpack.c.l.b16 %v362
  %v498 = vunpack.c.l.b16 %v363
  %v499 = vunpack.c.l.b16 %v364
  %v500 = vunpack.c.l.b16 %v365
  %v501 = vunpack.c.l.b16 %v366
  %v502 = vunpack.c.l.b16 %v367
  %v503 = vunpack.c.l.b16 %v368
  %v504 = vunpack.c.l.b16 %v369
  %v505 = vunpack.c.l.b16 %v370
  %v506 = vunpack.c.l.b16 %v371
  %v507 = vunpack.c.l.b16 %v372
  %v508 = vunpack.c.l.b16 %v373
  %v509 = vunpack.c.l.b16 %v374
  %v510 = vunpack.c.l.b16 %v375
  %v511 = vunpack.c.l.b16 %v376
  %v512 = vunpack.c.l.b16 %v377
  %v513 = vunpack.c.l.b16 %v378
  %v514 = vunpack.c.l.b16 %v379
  %v515 = vunpack.c.l.b16 %v380
  %v516 = vunpack.c.l.b16 %v381
  %v517 = vunpack.c.l.b16 %v382
  %v518 = vunpack.c.l.b16 %v383
  %v519 = vunpack.c.l.b16 %v384
  %v520 = vunpack.c.l.b16 %v385
  %v521 = vunpack.c.l.b16 %v386
  %v522 = vunpack.c.l.b16 %v387
  %v523 = vunpack.c.l.b16 %v388
  %v524 = vunpack.c.l.b16 %v389
  %v525 = vunpack.c.l.b16 %v390
  %v526 = vunpack.c.l.b16 %v391
  %v527 = vunpack.c.l.b16 %v392
  %v528 = vunpack.c.l.b16 %v393
  %v529 = vunpack.c.l.b16 %v394
  %v530 = vunpack.c.l.b16 %v395
  %v531 = vunpack.c.l.b16 %v396
  %v532 = vunpack.c.l.b16 %v397
  %v533 = vunpack.c.l.b16 %v398
  %v534 = vunpack.c.l.b16 %v399
  %v535 = vunpack.c.l.b16 %v400
  %v536 = vunpack.c.l.b16 %v401
  %v537 = vunpack.c.l.b16 %v402
  %v538 = vunpack.c.l.b16 %v403
  %v539 = vunpack.c.l.b16 %v404
  %v540 = vunpack.c.l.b16 %v405
  %v541 = vunpack.c.l.b16 %v406
  %v542 = vunpack.c.l.b16 %v407
  %v543 = vunpack.c.l.b16 %v408
  %v544 = vunpack.c.l.b16 %v409
  %v545 = vunpack.c.l.b16 %v410
  %v546 = vunpack.c.l.b16 %v411
  %v547 = vunpack.c.l.b16 %v412
  %v548 = vunpack.c.l.b16 %v413
  %v549 = vunpack.c.l.b16 %v414
  %v550 = vunpack.c.l.b16 %v415
  %v551 = vunpack.c.l.b16 %v416
  %v552 = vunpack.c.l.b16 %v417
  %v553 = vunpack.c.l.b16 %v418
  %v554 = vunpack.c.l.b16 %v419
  %v555 = vunpack.c.l.b16 %v420
  %v556 = vunpack.c.l.b16 %v421
  %v557 = vunpack.c.l.b16 %v422
  %v558 = vpack.c.b16 %v495, %v494
  %v559 = vpack.c.b16 %v497, %v496
  %v560 = vpack.c.b16 %v499, %v498
  %v561 = vpack.c.b16 %v501, %v500
  %v562 = vpack.c.b16 %v503, %v502
  %v563 = vpack.c.b16 %v505, %v504
  %v564 = vpack.c.b16 %v507, %v506
  %v565 = vpack.c.b16 %v509, %v508
  %v566 = vpack.c.b16 %v511, %v510
  %v567 = vpack.c.b16 %v513, %v512
  %v568 = vpack.c.b16 %v515, %v514
  %v569 = vpack.c.b16 %v517, %v516
  %v570 = vpack.c.b16 %v519, %v518
  %v571 = vpack.c.b16 %v521, %v520
  %v572 = vpack.c.b16 %v523, %v522
  %v573 = vpack.c.b16 %v525, %v524
  %v574 = vpack.c.b16 %v527, %v526
  %v575 = vpack.c.b16 %v529, %v528
  %v576 = vpack.c.b16 %v531, %v530
  %v577 = vpack.c.b16 %v533, %v532
  %v578 = vpack.c.b16 %v535, %v534
  %v579 = vpack.c.b16 %v537, %v536
  %v580 = vpack.c.b16 %v539, %v538
  %v581 = vpack.c.b16 %v541, %v540
  %v582 = vpack.c.b16 %v543, %v542
  %v583 = vpack.c.b16 %v545, %v544
  %v584 = vpack.c.b16 %v547, %v546
  %v585 = vpack.c.b16 %v549, %v548
  %v586 = vpack.c.b16 %v551, %v550
  %v587 = vpack.c.b16 %v553, %v552
  %v588 = vpack.c.b16 %v555, %v554
  %v589 = vpack.c.b16 %v557, %v556
  %622 = vmatprep.subr.bf16.mxu0 0
  %623 = vmatpush1.bf16.msra.mxu0 %v558
  %624 = vmatprep.subr.bf16.mxu0 0
  %625 = vmatpush1.bf16.msra.mxu0 %v559
  %626 = vmatprep.subr.bf16.mxu0 0
  %627 = vmatpush1.bf16.msra.mxu0 %v560
  %628 = vmatprep.subr.bf16.mxu0 0
  %629 = vmatpush1.bf16.msra.mxu0 %v561
  %630 = vmatprep.subr.bf16.mxu0 0
  %631 = vmatpush1.bf16.msra.mxu0 %v562
  %632 = vmatprep.subr.bf16.mxu0 0
  %633 = vmatpush1.bf16.msra.mxu0 %v563
  %634 = vmatprep.subr.bf16.mxu0 0
  %635 = vmatpush1.bf16.msra.mxu0 %v564
  %636 = vmatprep.subr.bf16.mxu0 0
  %637 = vmatpush1.bf16.msra.mxu0 %v565
  %638 = vmatprep.subr.bf16.mxu0 0
  %639 = vmatpush1.bf16.msra.mxu0 %v566
  %640 = vmatprep.subr.bf16.mxu0 0
  %641 = vmatpush1.bf16.msra.mxu0 %v567
  %642 = vmatprep.subr.bf16.mxu0 0
  %643 = vmatpush1.bf16.msra.mxu0 %v568
  %644 = vmatprep.subr.bf16.mxu0 0
  %645 = vmatpush1.bf16.msra.mxu0 %v569
  %646 = vmatprep.subr.bf16.mxu0 0
  %647 = vmatpush1.bf16.msra.mxu0 %v570
  %648 = vmatprep.subr.bf16.mxu0 0
  %649 = vmatpush1.bf16.msra.mxu0 %v571
  %650 = vmatprep.subr.bf16.mxu0 0
  %651 = vmatpush1.bf16.msra.mxu0 %v572
  %652 = vmatprep.subr.bf16.mxu0 0
  %653 = vmatpush1.bf16.msra.mxu0 %v573
  %654 = vmatprep.mubr.bf16.mxu0 %v356
  %655 = vmatmul.mubr.bf16.gmra.mrb[0].mxu0 %v355
  %v656 = vpop.f32.mrb[0].mxu0
  %v657 = vadd.f32 %v428, %v656
  %v658 = vpop.f32.mrb[0].mxu0
  %v659 = vpop.f32.mrb[0].mxu0
  %v660 = vpop.f32.mrb[0].mxu0
  %661 = vdwg.mxu0
  %662 = vmatprep.subr.bf16.mxu0 0
  %663 = vmatpush1.bf16.msra.mxu0 %v574
  %664 = vmatprep.subr.bf16.mxu0 0
  %665 = vmatpush1.bf16.msra.mxu0 %v575
  %666 = vmatprep.subr.bf16.mxu0 0
  %667 = vmatpush1.bf16.msra.mxu0 %v576
  %668 = vmatprep.subr.bf16.mxu0 0
  %669 = vmatpush1.bf16.msra.mxu0 %v577
  %670 = vmatprep.subr.bf16.mxu0 0
  %671 = vmatpush1.bf16.msra.mxu0 %v578
  %672 = vmatprep.subr.bf16.mxu0 0
  %673 = vmatpush1.bf16.msra.mxu0 %v579
  %674 = vmatprep.subr.bf16.mxu0 0
  %675 = vmatpush1.bf16.msra.mxu0 %v580
  %676 = vmatprep.subr.bf16.mxu0 0
  %677 = vmatpush1.bf16.msra.mxu0 %v581
  %678 = vmatprep.subr.bf16.mxu0 0
  %679 = vmatpush1.bf16.msra.mxu0 %v582
  %680 = vmatprep.subr.bf16.mxu0 0
  %681 = vmatpush1.bf16.msra.mxu0 %v583
  %682 = vmatprep.subr.bf16.mxu0 0
  %683 = vmatpush1.bf16.msra.mxu0 %v584
  %684 = vmatprep.subr.bf16.mxu0 0
  %685 = vmatpush1.bf16.msra.mxu0 %v585
  %686 = vmatprep.subr.bf16.mxu0 0
  %687 = vmatpush1.bf16.msra.mxu0 %v586
  %688 = vmatprep.subr.bf16.mxu0 0
  %689 = vmatpush1.bf16.msra.mxu0 %v587
  %690 = vmatprep.subr.bf16.mxu0 0
  %691 = vmatpush1.bf16.msra.mxu0 %v588
  %692 = vmatprep.subr.bf16.mxu0 0
  %693 = vmatpush1.bf16.msra.mxu0 %v589
  %694 = vmatprep.mubr.bf16.mxu0 %v358
  %695 = vmatmul.mubr.bf16.gmra.mrb[0].mxu0 %v357
  %v696 = vpop.f32.mrb[0].mxu0
  %v697 = vadd.f32 %v657, %v696
  %v698 = vpop.f32.mrb[0].mxu0
  %v699 = vpop.f32.mrb[0].mxu0
  %v700 = vpop.f32.mrb[0].mxu0
  %701 = vdwg.mxu0
  %702 = vst [vmem:[%s5] sm:$0xff] %v697
  // Predicated region
  $region22: #{mlp_forward.1} parent=0 // pred_check
    _
  $region23: #{mlp_forward.1} parent=0 // pred_check_branch
    %704 = sbr.rel (0) target = $region25
  $region24: #{mlp_forward.1} parent=0 // pred_region
    _
  $region25: #{mlp_forward.1} parent=0 // pred_fallthru
    _
  // Predicated region
  $region26: #{mlp_forward.1} parent=0 // pred_check
    _
  $region27: #{mlp_forward.1} parent=0 // pred_check_branch
    %706 = sbr.rel (0) target = $region29
  $region28: #{mlp_forward.1} parent=0 // pred_region
    _
  $region29: #{mlp_forward.1} parent=0 // pred_fallthru
    _

</llo_original>
